<compile_context>
chip_gen: v6e
topology: v6e:2x2x1
jax: 0.10.0
libtpu: 0.0.40
codegen_flags: <defaults>
</compile_context>

<pallas_src>
import functools

import jax
import jax.numpy as jnp
from jax.experimental import pallas as pl
from jax.experimental.pallas import tpu as pltpu


# ----------------------------- kernels ------------------------------------- #

def _add_pe_kernel(x_ref, pe_ref, o_ref):
    # x_ref: (tile_b, tile_c)  pe_ref: (1, tile_c)  o_ref: (tile_b, tile_c)
    o_ref[...] = x_ref[...] + pe_ref[...]


def _add_pe_dropout_kernel(x_ref, pe_ref, bits_ref, o_ref, *, thresh, scale):
    # bits_ref: (tile_b, tile_c) uint32 — drop iff bits < thresh (thresh = p * 2^32)
    val = x_ref[...] + pe_ref[...]
    keep = bits_ref[...] >= jnp.uint32(thresh)
    o_ref[...] = jnp.where(keep, val * jnp.asarray(scale, val.dtype),
                           jnp.zeros_like(val))


# ----------------------------- tiling -------------------------------------- #

def _tile_budget():
    """(streamed-tile VMEM budget, vmem_limit_bytes), gated on TPU generation."""
    try:
        vmem = pltpu.get_tpu_info().vmem_capacity_bytes
    except Exception:
        vmem = 64 << 20                       # unknown (e.g. interpret): be conservative
    if vmem >= (96 << 20):                    # v5e / v6e: 128 MiB physical VMEM
        return 32 << 20, 64 << 20
    return 24 << 20, 48 << 20                 # v7x: 64 MiB per TensorCore


def _choose_tiles(B, C, itemsize, bytes_per_elem, budget_bytes):
    """Pick (tile_b, tile_c) for the flattened (B, C=S*D) layout.

    budget_bytes covers ALL double-buffered streamed tiles (x in + out [+ bits]).
    tile_c is a multiple of 128 (or C); tile_b is a multiple of the sublane pack
    (or B), and is kept >= min(B, sublane) so the pe tile stays small.
    """
    lane = 128
    sub = 8 * max(1, 4 // itemsize)           # 8 f32 / 16 bf16 / 32 int8 sublane pack
    tile_elems = max(sub * lane, budget_bytes // (2 * bytes_per_elem))
    tb_min = min(B, sub)
    tile_c = min(C, max(lane, ((tile_elems // tb_min) // lane) * lane))
    tile_b = max(1, tile_elems // tile_c)
    if tile_b >= B:
        tile_b = B
    else:
        tile_b = min(B, max(sub, (tile_b // sub) * sub))
    return tile_b, tile_c


# ----------------------------- wrapper -------------------------------------- #

def positional_embeddings(x, emb_table, *, start=0, dropout_p=0.0,
                          deterministic=True, rng_key=None,
                          budget_bytes=None, vmem_limit_bytes=None):
    """x: (B, S, D); emb_table: (max_len, D). Returns dropout(x + emb[start:start+S])."""
    B, S, D = x.shape
    # Positions are the same for every batch element: only rows [start, start+S)
    # of the table are needed; cast once so the kernel never converts.
    pe = jax.lax.dynamic_slice(emb_table, (start, 0), (S, D)).astype(x.dtype)

    apply_dropout = (not deterministic) and dropout_p > 0.0
    if apply_dropout and dropout_p >= 1.0:
        return jnp.zeros_like(x)

    # Lane-dense flattening: last block dim is S*D (>=128-multiple tiles even for
    # small d_model); pe broadcasts along the batch axis inside the kernel.
    C = S * D
    x2 = x.reshape(B, C)
    pe2 = pe.reshape(1, C)

    if budget_bytes is None or vmem_limit_bytes is None:
        bb, vl = _tile_budget()
        budget_bytes = budget_bytes if budget_bytes is not None else bb
        vmem_limit_bytes = vmem_limit_bytes if vmem_limit_bytes is not None else vl

    itemsize = jnp.dtype(x.dtype).itemsize
    bytes_per_elem = 2 * itemsize + (4 if apply_dropout else 0)   # x in + out (+ uint32 bits)
    tile_b, tile_c = _choose_tiles(B, C, itemsize, bytes_per_elem, budget_bytes)
    grid = (pl.cdiv(C, tile_c), pl.cdiv(B, tile_b))   # feature outer, batch inner

    x_spec = pl.BlockSpec((tile_b, tile_c), lambda ci, bi: (bi, ci))
    pe_spec = pl.BlockSpec((1, tile_c), lambda ci, bi: (0, ci))
    out_spec = pl.BlockSpec((tile_b, tile_c), lambda ci, bi: (bi, ci))

    if apply_dropout:
        if rng_key is None:
            rng_key = jax.random.PRNGKey(0)
        # Randomness from the wrapper (hardware PRNG has no interpret-mode lowering).
        bits = jax.random.bits(rng_key, (B, C), dtype=jnp.uint32)
        thresh = min((1 << 32) - 1, int(round(float(dropout_p) * float(1 << 32))))
        scale = 1.0 / (1.0 - float(dropout_p))
        kernel = functools.partial(_add_pe_dropout_kernel, thresh=thresh, scale=scale)
        bits_spec = pl.BlockSpec((tile_b, tile_c), lambda ci, bi: (bi, ci))
        in_specs = [x_spec, pe_spec, bits_spec]
        args = (x2, pe2, bits)
    else:
        kernel = _add_pe_kernel
        in_specs = [x_spec, pe_spec]
        args = (x2, pe2)

    out2 = pl.pallas_call(
        kernel,
        out_shape=jax.ShapeDtypeStruct((B, C), x.dtype),
        grid=grid,
        in_specs=in_specs,
        out_specs=out_spec,
        compiler_params=pltpu.CompilerParams(
            dimension_semantics=("parallel", "parallel"),
            vmem_limit_bytes=vmem_limit_bytes,
        ),
    )(*args)
    return out2.reshape(B, S, D)


# ----------------------------- test ----------------------------------------- #

if __name__ == "__main__":
    key = jax.random.PRNGKey(0)
    k_x, k_emb, k_drop = jax.random.split(key, 3)

    batch, seq, d_model, max_len = 2, 8, 32, 64
    dropout_p = 0.1
    start = 3

    x = jax.random.normal(k_x, (batch, seq, d_model), dtype=jnp.float32)
    emb_table = jax.random.normal(k_emb, (max_len, d_model), dtype=jnp.float32) * 0.02

    # --- eval mode (dropout = identity): exact check vs pure-JAX reference ---
    y = positional_embeddings(x, emb_table, start=start, dropout_p=dropout_p,
                              deterministic=True)
    y = jax.block_until_ready(y)

    pe_ref = jax.lax.dynamic_slice(emb_table, (start, 0), (seq, d_model))
    y_ref = x + pe_ref[None, :, :]
    assert jnp.allclose(y, y_ref, atol=1e-6, rtol=1e-6), "mismatch vs reference"

    # --- train mode: every element is 0 or (x+pe)/(1-p) ---
    y_drop = positional_embeddings(x, emb_table, start=start, dropout_p=dropout_p,
                                   deterministic=False, rng_key=k_drop)
    y_drop = jax.block_until_ready(y_drop)
    scaled = y_ref / (1.0 - dropout_p)
    ok = jnp.abs(y_drop) < 1e-6
    ok |= jnp.abs(y_drop - scaled) < 1e-4
    assert bool(jnp.all(ok)), "dropout output is not in {0, (x+pe)/(1-p)}"

    print("KERNEL_OK")
</pallas_src>

<mosaic_0001>
module attributes {stable_mosaic.version = 11 : i64} {
  func.func @_add_pe_kernel(%arg0: i32, %arg1: i32, %arg2: memref<2x256xf32, #tpu.memory_space<vmem>>, %arg3: memref<1x256xf32, #tpu.memory_space<vmem>>, %arg4: memref<2x256xf32, #tpu.memory_space<vmem>>) attributes {dimension_semantics = [#tpu.dimension_semantics<parallel>, #tpu.dimension_semantics<parallel>], iteration_bounds = array<i64: 1, 1>, scalar_prefetch = 0 : i64, scratch_operands = 0 : i64, tpu.core_type = #tpu.core_type<tc>, window_params = [{transform_indices = @transform_0, window_bounds = array<i64: 2, 256>}, {transform_indices = @transform_1, window_bounds = array<i64: 1, 256>}, {transform_indices = @transform_2, window_bounds = array<i64: 2, 256>}]} {
    %c0 = arith.constant 0 : index
    %c0_0 = arith.constant 0 : index
    %0 = vector.load %arg2[%c0, %c0_0] : memref<2x256xf32, #tpu.memory_space<vmem>>, vector<2x256xf32>
    %c0_1 = arith.constant 0 : index
    %c0_2 = arith.constant 0 : index
    %1 = vector.load %arg3[%c0_1, %c0_2] : memref<1x256xf32, #tpu.memory_space<vmem>>, vector<1x256xf32>
    %2 = vector.broadcast %1 : vector<1x256xf32> to vector<2x256xf32>
    %3 = arith.addf %0, %2 : vector<2x256xf32>
    %c0_3 = arith.constant 0 : index
    %c0_4 = arith.constant 0 : index
    %4 = vector.load %arg4[%c0_3, %c0_4] : memref<2x256xf32, #tpu.memory_space<vmem>>, vector<2x256xf32>
    tpu.vector_store %arg4[%c0_3, %c0_4], %3 {strides = array<i32>} : memref<2x256xf32, #tpu.memory_space<vmem>>, vector<2x256xf32>,
    return
  }
  func.func @transform_0(%arg0: i32, %arg1: i32) -> (i32, i32) {
    %c0_i32 = arith.constant 0 : i32
    return %arg1, %arg0 : i32, i32
  }
  func.func @transform_1(%arg0: i32, %arg1: i32) -> (i32, i32) {
    %c0_i32 = arith.constant 0 : i32
    %c0_i32_0 = arith.constant 0 : i32
    return %c0_i32, %arg0 : i32, i32
  }
  func.func @transform_2(%arg0: i32, %arg1: i32) -> (i32, i32) {
    %c0_i32 = arith.constant 0 : i32
    return %arg1, %arg0 : i32, i32
  }
}

</mosaic_0001>

<llo_original>
// kernel: tpu_custom_call.1
$region0: #{tpu_custom_call.1}
  #allocation0 [shape = 'u32[]', space=smem, size = 0x4, offset = 0x4, fixed_abs, tag = 'smem constant byte address 0x4 - core index']
  #allocation1 [shape = 'u32[144,128]{1,0:T(1,128)}', space=vmem, size = 0x12000, scoped, tag = 'internal scratch']
  %s0 = inlined_call_operand.hbm [shape: f32[2,256], index: 0, kind: input, shape index: {}]
  %s1 = inlined_call_operand.hbm [shape: f32[1,256], index: 1, kind: input, shape index: {}]
  %s2 = inlined_call_operand.hbm [shape: f32[2,256], index: 2, kind: output, shape index: {}]
  %s3 = sld [smem:[#allocation0]]
  $region26: #{tpu_custom_call.1} parent=0
    _
  %s5 = ssub.s32 1, %s3
  %s6 = scalar_select 0, %s5, %s3
  $region1: #{tpu_custom_call.1} parent=0
    #allocation2 [shape = 'u8[2048]{0}', space=vmem, size = 0x800, scoped, tag = 'input window, operand 0, single buffered']
    #allocation3 [shape = 's32[1]{0}', space=sflag, size = 0x4, scoped, tag = 'scoped memory for tpu_custom_call.1']
    #allocation4 [shape = 's32[1]{0}', space=sflag, size = 0x4, scoped, tag = 'scoped memory for tpu_custom_call.1']
    #allocation5 [shape = 'u8[1024]{0}', space=vmem, size = 0x400, scoped, tag = 'input window, operand 1, single buffered']
    #allocation6 [shape = 's32[1]{0}', space=sflag, size = 0x4, scoped, tag = 'scoped memory for tpu_custom_call.1']
    #allocation7 [shape = 'u8[2048]{0}', space=vmem, size = 0x800, scoped, tag = 'output window, operand 0, single buffered']
    %7 = vsyncpa [#allocation3], 0
    %8 = vsyncpa [#allocation6], 0
    %9 = vsyncpa [#allocation4], 0
    // Predicated region
    $region2: #{tpu_custom_call.1} parent=1 // pred_check
      _
    $region3: #{tpu_custom_call.1} parent=1 // pred_check_branch
      %11 = sbr.rel (0) target = $region5
    $region4: #{tpu_custom_call.1} parent=1 // pred_region
      %s13 = ssub.s32 64, 64
      %14 = vsyncadd [#allocation3], %s13
      %s16 = sshll.u32 [#allocation2], 4
      %s17 = int_to_ptr.vmem [resolvable:$true] %s16
      %19 = dma.hbm_to_vmem [thread:$0]  %s0, 64, %s17, [#allocation3]
    $region5: #{tpu_custom_call.1} parent=1 // pred_fallthru
      _
    // Predicated region
    $region6: #{tpu_custom_call.1} parent=1 // pred_check
      _
    $region7: #{tpu_custom_call.1} parent=1 // pred_check_branch
      %21 = sbr.rel (0) target = $region9
    $region8: #{tpu_custom_call.1} parent=1 // pred_region
      %s23 = ssub.s32 32, 32
      %24 = vsyncadd [#allocation6], %s23
      %s26 = sshll.u32 [#allocation5], 4
      %s27 = int_to_ptr.vmem [resolvable:$true] %s26
      %29 = dma.hbm_to_vmem [thread:$0]  %s1, 32, %s27, [#allocation6]
    $region9: #{tpu_custom_call.1} parent=1 // pred_fallthru
      _
    // Predicated region
    $region10: #{tpu_custom_call.1} parent=1 // pred_check
      _
    $region11: #{tpu_custom_call.1} parent=1 // pred_check_branch
      %31 = sbr.rel (0) target = $region13
    $region12: #{tpu_custom_call.1} parent=1 // pred_region
      %32 = dma.done [#allocation3], 64
    $region13: #{tpu_custom_call.1} parent=1 // pred_fallthru
      _
    // Predicated region
    $region14: #{tpu_custom_call.1} parent=1 // pred_check
      _
    $region15: #{tpu_custom_call.1} parent=1 // pred_check_branch
      %34 = sbr.rel (0) target = $region17
    $region16: #{tpu_custom_call.1} parent=1 // pred_region
      %35 = dma.done [#allocation6], 32
    $region17: #{tpu_custom_call.1} parent=1 // pred_fallthru
      _
    %v36 = vld [vmem:[#allocation2] sm:$0xf]
    %v37 = vld [vmem:[#allocation5] sm:$0x3]
    %v39 = vlaneseq
    %v40 = vshrl.u32 %v39, 7
    %v41 = vsub.s32 0, %v40
    %v42 = vrot.slane %v37, %v41
    %v43 = vlaneseq
    %v44 = vshrl.u32 %v43, 7
    %v45 = vsub.s32 1, %v44
    %v46 = vrot.slane %v37, %v45
    %v47 = vcombine.low %v42, %v46
    %v49 = vunpack.c.l.s4 1983009808
    %v50 = vunpack.c.0.s8 %v49
    %v51 = vlaneseq
    %v52 = vshrl.u32 %v51, 7
    %v53 = vsub.s32 %v50, %v52
    %v54 = vrot.slane %v47, %v53
    %v56 = vadd.f32 %v36, %v54
    %57 = vst [vmem:[#allocation7] sm:$0xf] %v56
    // Predicated region
    $region18: #{tpu_custom_call.1} parent=1 // pred_check
      _
    $region19: #{tpu_custom_call.1} parent=1 // pred_check_branch
      %59 = sbr.rel (0) target = $region21
    $region20: #{tpu_custom_call.1} parent=1 // pred_region
      %s61 = ssub.s32 64, 64
      %62 = vsyncadd [#allocation4], %s61
      %s64 = sshll.u32 [#allocation7], 4
      %s65 = int_to_ptr.vmem [resolvable:$true] %s64
      %67 = dma.vmem_to_hbm [thread:$0]  %s65, 64, %s2, [#allocation4]
    $region21: #{tpu_custom_call.1} parent=1 // pred_fallthru
      _
    // Predicated region
    $region22: #{tpu_custom_call.1} parent=1 // pred_check
      _
    $region23: #{tpu_custom_call.1} parent=1 // pred_check_branch
      %69 = sbr.rel (0) target = $region25
    $region24: #{tpu_custom_call.1} parent=1 // pred_region
      %70 = dma.done [#allocation4], 64
    $region25: #{tpu_custom_call.1} parent=1 // pred_fallthru
      _
    %71 = vsyncpa [#allocation3], 1
    %72 = vsyncpa [#allocation6], 1
    %73 = vsyncpa [#allocation4], 1

</llo_original>
